<compile_context>
chip_gen: v7x
topology: tpu7x:2x2x1
jax: 0.10.0
libtpu: 0.0.40
codegen_flags: <defaults>
</compile_context>

<pallas_src>
import functools

import jax
import jax.numpy as jnp
from jax.experimental import pallas as pl
from jax.experimental.pallas import tpu as pltpu


def _concat_pool_kernel(x_ref, o_ref, max_acc, sum_acc, *,
                        inv_hw, hw, hw_tile, mask_hw):
    # x_ref:   (nb, c_tile, hw_tile)  NCHW block, H*W on the 128-lane axis
    # o_ref:   (nb, 2, c_tile)        row 0 = max, row 1 = mean
    # max_acc: (nb, c_tile) f32       running max accumulator
    # sum_acc: (nb, c_tile) f32       running sum accumulator
    j = pl.program_id(2)

    @pl.when(j == 0)
    def _init():
        max_acc[...] = jnp.full(max_acc.shape, -jnp.inf, dtype=jnp.float32)
        sum_acc[...] = jnp.zeros(sum_acc.shape, dtype=jnp.float32)

    x = x_ref[...]
    if mask_hw:
        # Last spatial tile may run past H*W (pl.cdiv grid): mask the padded
        # lanes with -inf for the max path and 0 for the sum path.
        lane = jax.lax.broadcasted_iota(jnp.int32, x.shape, dimension=2)
        valid = (j * hw_tile + lane) < hw
        if jnp.issubdtype(x.dtype, jnp.floating):
            neg = jnp.array(-jnp.inf, dtype=x.dtype)
        else:
            neg = jnp.array(jnp.iinfo(x.dtype).min, dtype=x.dtype)
        x_max = jnp.where(valid, x, neg)
        x_sum = jnp.where(valid, x, jnp.zeros((), dtype=x.dtype)).astype(jnp.float32)
    else:
        x_max = x
        x_sum = x.astype(jnp.float32)

    # Partial max in the input dtype (exact), upcast only the tiny result;
    # sums accumulate in f32 for accuracy.
    max_acc[...] = jnp.maximum(max_acc[...],
                               jnp.max(x_max, axis=-1).astype(jnp.float32))
    sum_acc[...] = sum_acc[...] + jnp.sum(x_sum, axis=-1)

    @pl.when(j == pl.num_programs(2) - 1)
    def _finalize():
        nb, ct = max_acc.shape
        o_ref[:, 0:1, :] = max_acc[...].astype(o_ref.dtype).reshape(nb, 1, ct)
        o_ref[:, 1:2, :] = (sum_acc[...] * inv_hw).astype(o_ref.dtype).reshape(nb, 1, ct)


def _divisors_desc(n):
    return [d for d in range(n, 0, -1) if n % d == 0]


def _choose_tiles(n, c, hw, itemsize, budget):
    """Pick (nb, c_tile, hw_tile) for input blocks of shape (nb, c_tile, hw_tile).

    Legality honoured:
      * hw_tile == HW, or a multiple of 128 (lane axis); non-divisor tiles are
        masked in-kernel.
      * c_tile == C, or a multiple-of-128 divisor of C (keeps both the input
        sublane dim and the (nb, 2, c_tile) output lane dim legal).
      * nb divides N.
    """
    def hw_tile_for(c_tile):
        if c_tile * hw * itemsize <= budget:
            return hw
        ht = (budget // (c_tile * itemsize)) // 128 * 128
        return ht if ht >= 128 else min(hw, 128)

    # Channel tile: full C unless even a minimal 128-lane spatial tile would
    # not fit, in which case take the largest multiple-of-128 divisor of C.
    c_tile = c
    min_ht = min(hw, 128)
    if c * min_ht * itemsize > budget:
        fitting_c = [d for d in _divisors_desc(c)
                     if d % 128 == 0 and d * min_ht * itemsize <= budget]
        if fitting_c:
            c_tile = fitting_c[0]
        # else: pathological huge C with no suitable divisor; keep full C
        # (still far below VMEM for realistic channel counts).

    hw_tile = hw_tile_for(c_tile)

    # Batch tile: largest divisor of N whose block fits the budget.
    per_batch = c_tile * hw_tile * itemsize
    fitting_nb = [d for d in _divisors_desc(n) if d * per_batch <= budget]
    nb = fitting_nb[0] if fitting_nb else 1

    # v7x megacore: prefer >=2 iterations on the parallel grid axes as long as
    # blocks stay reasonably large (>= 512 KiB); v5e/v6e are insensitive.
    if (n // nb) * (c // c_tile) < 2:
        split = False
        for d in fitting_nb:
            if n // d >= 2 and d * per_batch >= (512 << 10):
                nb, split = d, True
                break
        if (not split and c_tile == c and c % 256 == 0
                and (c // 2) * hw_tile * itemsize >= (512 << 10)):
            c_tile = c // 2
            hw_tile = hw_tile_for(c_tile)

    return nb, c_tile, hw_tile


def _concat_pool_nchw(x3, *, block_budget_bytes=6 * 1024 * 1024):
    """x3: (N, C, H*W) -> (N, 2, C); row 0 = max, row 1 = mean."""
    n, c, hw = x3.shape
    itemsize = jnp.dtype(x3.dtype).itemsize
    nb, c_tile, hw_tile = _choose_tiles(n, c, hw, itemsize, block_budget_bytes)

    hw_steps = pl.cdiv(hw, hw_tile)
    grid = (n // nb, c // c_tile, hw_steps)
    mask_hw = (hw % hw_tile) != 0

    kernel = functools.partial(
        _concat_pool_kernel,
        inv_hw=float(1.0 / hw),
        hw=hw,
        hw_tile=hw_tile,
        mask_hw=mask_hw,
    )

    # Deeper input pipelining only pays off (and is only meaningful) when the
    # grid actually has several steps.
    in_spec_kwargs = {}
    if grid[0] * grid[1] * grid[2] >= 3:
        in_spec_kwargs["pipeline_mode"] = pl.Buffered(3)

    return pl.pallas_call(
        kernel,
        out_shape=jax.ShapeDtypeStruct((n, 2, c), x3.dtype),
        grid_spec=pltpu.PrefetchScalarGridSpec(
            num_scalar_prefetch=0,
            grid=grid,
            in_specs=[
                pl.BlockSpec((nb, c_tile, hw_tile),
                             lambda i, ci, j: (i, ci, j),
                             **in_spec_kwargs),
            ],
            out_specs=pl.BlockSpec((nb, 2, c_tile), lambda i, ci, j: (i, 0, ci)),
            scratch_shapes=[
                pltpu.VMEM((nb, c_tile), jnp.float32),  # running max
                pltpu.VMEM((nb, c_tile), jnp.float32),  # running sum
            ],
        ),
        compiler_params=pltpu.CompilerParams(
            dimension_semantics=("parallel", "parallel", "arbitrary"),
            # Mandatory on v5e (16 MiB default scoped VMEM); leaves headroom
            # under v7x's 64 MiB physical VMEM with 3x6 MiB input buffers.
            vmem_limit_bytes=40 * 1024 * 1024,
        ),
    )(x3)


def adaptive_concat_pool2d(x, *, block_budget_bytes=6 * 1024 * 1024):
    """x: (N, C, H, W) -> (N, 2C, 1, 1) = torch.cat([AdaptiveMaxPool2d(1)(x),
    AdaptiveAvgPool2d(1)(x)], dim=1)."""
    # TODO(synk): only k=1 (global pooling, the module default) is implemented;
    # k>1 adaptive bins would need a windowed kernel.
    n, c, h, w = x.shape
    x3 = x.reshape(n, c, h * w)  # collapses contiguous dims: no data movement
    out = _concat_pool_nchw(x3, block_budget_bytes=block_budget_bytes)  # (N, 2, C)
    return out.reshape(n, 2 * c, 1, 1)


if __name__ == "__main__":
    def reference(x):
        return jnp.concatenate(
            [jnp.max(x, axis=(2, 3), keepdims=True),
             jnp.mean(x, axis=(2, 3), keepdims=True)],
            axis=1)

    # Case 1: small shape, single block, no masking.
    N, C, H, W = 2, 4, 16, 16
    x = jax.random.normal(jax.random.PRNGKey(0), (N, C, H, W), dtype=jnp.float32)
    y = adaptive_concat_pool2d(x)
    jax.block_until_ready(y)
    assert y.shape == (N, 2 * C, 1, 1), y.shape
    assert jnp.allclose(y, reference(x), atol=1e-5, rtol=1e-5), "case 1 mismatch"

    # Case 2: force the tiled reduction path (hw_tile=128 over H*W=144 -> cdiv
    # grid + in-kernel masking) and the Buffered(3) pipeline via a tiny budget.
    N2, C2, H2, W2 = 2, 8, 12, 12
    x2 = jax.random.normal(jax.random.PRNGKey(0), (N2, C2, H2, W2), dtype=jnp.float32)
    y2 = adaptive_concat_pool2d(x2, block_budget_bytes=C2 * 128 * 4)
    jax.block_until_ready(y2)
    assert y2.shape == (N2, 2 * C2, 1, 1), y2.shape
    assert jnp.allclose(y2, reference(x2), atol=1e-5, rtol=1e-5), "case 2 mismatch"

    print("KERNEL_OK")
</pallas_src>

<mosaic_0001>
module attributes {stable_mosaic.version = 11 : i64} {
  func.func @_concat_pool_kernel(%arg0: i32, %arg1: i32, %arg2: i32, %arg3: memref<2x4x256xf32, #tpu.memory_space<vmem>>, %arg4: memref<2x2x4xf32, #tpu.memory_space<vmem>>, %arg5: memref<2x4xf32, #tpu.memory_space<vmem>>, %arg6: memref<2x4xf32, #tpu.memory_space<vmem>>) attributes {dimension_semantics = [#tpu.dimension_semantics<parallel>, #tpu.dimension_semantics<parallel>, #tpu.dimension_semantics<arbitrary>], iteration_bounds = array<i64: 1, 1, 1>, scalar_prefetch = 0 : i64, scratch_operands = 2 : i64, tpu.core_type = #tpu.core_type<tc>, window_params = [{transform_indices = @transform_0, window_bounds = array<i64: 2, 4, 256>}, {transform_indices = @transform_1, window_bounds = array<i64: 2, 2, 4>}]} {
    %c0_i32 = arith.constant 0 : i32
    %0 = arith.cmpi eq, %arg2, %c0_i32 : i32
    %1 = arith.extui %0 : i1 to i32
    %c0_i32_0 = arith.constant 0 : i32
    %2 = arith.cmpi ne, %1, %c0_i32_0 : i32
    scf.if %2 {
      %cst_14 = arith.constant 0xFF800000 : f32
      %15 = vector.broadcast %cst_14 : f32 to vector<2x4xf32>
      %c0_15 = arith.constant 0 : index
      %c0_16 = arith.constant 0 : index
      %16 = vector.load %arg5[%c0_15, %c0_16] : memref<2x4xf32, #tpu.memory_space<vmem>>, vector<2x4xf32>
      tpu.vector_store %arg5[%c0_15, %c0_16], %15 {strides = array<i32>} : memref<2x4xf32, #tpu.memory_space<vmem>>, vector<2x4xf32>,
      %cst_17 = arith.constant 0.000000e+00 : f32
      %17 = vector.broadcast %cst_17 : f32 to vector<2x4xf32>
      %c0_18 = arith.constant 0 : index
      %c0_19 = arith.constant 0 : index
      %18 = vector.load %arg6[%c0_18, %c0_19] : memref<2x4xf32, #tpu.memory_space<vmem>>, vector<2x4xf32>
      tpu.vector_store %arg6[%c0_18, %c0_19], %17 {strides = array<i32>} : memref<2x4xf32, #tpu.memory_space<vmem>>, vector<2x4xf32>,
    } else {
    }
    %c0 = arith.constant 0 : index
    %c0_1 = arith.constant 0 : index
    %c0_2 = arith.constant 0 : index
    %3 = vector.load %arg3[%c0, %c0_1, %c0_2] : memref<2x4x256xf32, #tpu.memory_space<vmem>>, vector<2x4x256xf32>
    %c0_3 = arith.constant 0 : index
    %c0_4 = arith.constant 0 : index
    %4 = vector.load %arg5[%c0_3, %c0_4] : memref<2x4xf32, #tpu.memory_space<vmem>>, vector<2x4xf32>
    %cst = arith.constant dense<0xFF800000> : vector<2x4xf32>
    %5 = vector.multi_reduction <maximumf>, %3, %cst [2] : vector<2x4x256xf32> to vector<2x4xf32>
    %6 = arith.maximumf %4, %5 : vector<2x4xf32>
    %c0_5 = arith.constant 0 : index
    %c0_6 = arith.constant 0 : index
    %7 = vector.load %arg5[%c0_5, %c0_6] : memref<2x4xf32, #tpu.memory_space<vmem>>, vector<2x4xf32>
    tpu.vector_store %arg5[%c0_5, %c0_6], %6 {strides = array<i32>} : memref<2x4xf32, #tpu.memory_space<vmem>>, vector<2x4xf32>,
    %c0_7 = arith.constant 0 : index
    %c0_8 = arith.constant 0 : index
    %8 = vector.load %arg6[%c0_7, %c0_8] : memref<2x4xf32, #tpu.memory_space<vmem>>, vector<2x4xf32>
    %cst_9 = arith.constant dense<0.000000e+00> : vector<2x4xf32>
    %9 = vector.multi_reduction <add>, %3, %cst_9 [2] : vector<2x4x256xf32> to vector<2x4xf32>
    %10 = arith.addf %8, %9 : vector<2x4xf32>
    %c0_10 = arith.constant 0 : index
    %c0_11 = arith.constant 0 : index
    %11 = vector.load %arg6[%c0_10, %c0_11] : memref<2x4xf32, #tpu.memory_space<vmem>>, vector<2x4xf32>
    tpu.vector_store %arg6[%c0_10, %c0_11], %10 {strides = array<i32>} : memref<2x4xf32, #tpu.memory_space<vmem>>, vector<2x4xf32>,
    %c0_i32_12 = arith.constant 0 : i32
    %12 = arith.cmpi eq, %arg2, %c0_i32_12 : i32
    %13 = arith.extui %12 : i1 to i32
    %c0_i32_13 = arith.constant 0 : i32
    %14 = arith.cmpi ne, %13, %c0_i32_13 : i32
    scf.if %14 {
      %c0_14 = arith.constant 0 : index
      %c0_15 = arith.constant 0 : index
      %15 = vector.load %arg5[%c0_14, %c0_15] : memref<2x4xf32, #tpu.memory_space<vmem>>, vector<2x4xf32>
      %16 = vector.shape_cast %15 : vector<2x4xf32> to vector<2x1x4xf32>
      %c0_16 = arith.constant 0 : index
      %c0_17 = arith.constant 0 : index
      %c0_18 = arith.constant 0 : index
      %17 = vector.load %arg4[%c0_16, %c0_17, %c0_18] : memref<2x2x4xf32, #tpu.memory_space<vmem>>, vector<2x1x4xf32>
      tpu.vector_store %arg4[%c0_16, %c0_17, %c0_18], %16 {strides = array<i32>} : memref<2x2x4xf32, #tpu.memory_space<vmem>>, vector<2x1x4xf32>,
      %c0_19 = arith.constant 0 : index
      %c0_20 = arith.constant 0 : index
      %18 = vector.load %arg6[%c0_19, %c0_20] : memref<2x4xf32, #tpu.memory_space<vmem>>, vector<2x4xf32>
      %cst_21 = arith.constant 3.906250e-03 : f32
      %19 = vector.broadcast %cst_21 : f32 to vector<2x4xf32>
      %20 = arith.mulf %18, %19 : vector<2x4xf32>
      %21 = vector.shape_cast %20 : vector<2x4xf32> to vector<2x1x4xf32>
      %c0_22 = arith.constant 0 : index
      %c1 = arith.constant 1 : index
      %c0_23 = arith.constant 0 : index
      %22 = vector.load %arg4[%c0_22, %c1, %c0_23] : memref<2x2x4xf32, #tpu.memory_space<vmem>>, vector<2x1x4xf32>
      tpu.vector_store %arg4[%c0_22, %c1, %c0_23], %21 {strides = array<i32>} : memref<2x2x4xf32, #tpu.memory_space<vmem>>, vector<2x1x4xf32>,
    } else {
    }
    return
  }
  func.func @transform_0(%arg0: i32, %arg1: i32, %arg2: i32) -> (i32, i32, i32) {
    %c0_i32 = arith.constant 0 : i32
    return %arg0, %arg1, %arg2 : i32, i32, i32
  }
  func.func @transform_1(%arg0: i32, %arg1: i32, %arg2: i32) -> (i32, i32, i32) {
    %c0_i32 = arith.constant 0 : i32
    %c0_i32_0 = arith.constant 0 : i32
    return %arg0, %c0_i32, %arg1 : i32, i32, i32
  }
}

</mosaic_0001>

<llo_original>
// kernel: tpu_custom_call.1
$region0: #{tpu_custom_call.1}
  #allocation0 [shape = 'u32[]', space=smem, size = 0x4, offset = 0x4, fixed_abs, tag = 'smem constant byte address 0x4 - core index']
  #allocation1 [shape = 'u32[144,128]{1,0:T(1,128)}', space=vmem, size = 0x12000, scoped, tag = 'internal scratch']
  #allocation2 [shape = 'f32[2,4]{1,0:T(2,128)}', space=vmem, size = 0x400, scoped, tag = 'scratch operand']
  #allocation3 [shape = 'f32[2,4]{1,0:T(2,128)}', space=vmem, size = 0x400, scoped, tag = 'scratch operand']
  %s0 = inlined_call_operand.hbm [shape: f32[2,4,256], index: 0, kind: input, shape index: {}]
  %s1 = inlined_call_operand.hbm [shape: f32[2,2,4], index: 1, kind: output, shape index: {}]
  %s2 = sld [smem:[#allocation0]]
  $region26: #{tpu_custom_call.1} parent=0
    _
  %s4 = ssub.s32 1, %s2
  %s5 = scalar_select 0, %s4, %s2
  $region1: #{tpu_custom_call.1} parent=0
    #allocation4 [shape = 'u8[8192]{0}', space=vmem, size = 0x2000, scoped, tag = 'input window, operand 0, single buffered']
    #allocation5 [shape = 's32[1]{0}', space=sflag, size = 0x4, scoped, tag = 'scoped memory for tpu_custom_call.1']
    #allocation6 [shape = 's32[1]{0}', space=sflag, size = 0x4, scoped, tag = 'scoped memory for tpu_custom_call.1']
    #allocation7 [shape = 'u8[2048]{0}', space=vmem, size = 0x800, scoped, tag = 'output window, operand 0, single buffered']
    %6 = vsyncpa [#allocation5], 0
    %7 = vsyncpa [#allocation6], 0
    // Predicated region
    $region2: #{tpu_custom_call.1} parent=1 // pred_check
      _
    $region3: #{tpu_custom_call.1} parent=1 // pred_check_branch
      %9 = sbr.rel (0) target = $region5
    $region4: #{tpu_custom_call.1} parent=1 // pred_region
      %s11 = ssub.s32 256, 256
      %12 = vsyncadd [#allocation5], %s11
      %s13 = sshll.u32 [#allocation4], 4
      %s14 = int_to_ptr.vmem [resolvable:$true] %s13
      %19 = dma.hbm_to_vmem [thread:$0]  %s0, 256, %s14, [#allocation5], 128, 128, 8
    $region5: #{tpu_custom_call.1} parent=1 // pred_fallthru
      _
    // Predicated region
    $region6: #{tpu_custom_call.1} parent=1 // pred_check
      _
    $region7: #{tpu_custom_call.1} parent=1 // pred_check_branch
      %21 = sbr.rel (0) target = $region9
    $region8: #{tpu_custom_call.1} parent=1 // pred_region
      %22 = dma.done [#allocation5], 256
    $region9: #{tpu_custom_call.1} parent=1 // pred_fallthru
      _
    %p23 = scmp.eq.s32.totalorder 0, 0
    // Predicated region
    $region10: #{tpu_custom_call.1} parent=1 // pred_check
      %p24 = pneg %p23
    $region11: #{tpu_custom_call.1} parent=1 // pred_check_branch
      %26 = sbr.rel (%p24) target = $region13
    $region12: #{tpu_custom_call.1} parent=1 // pred_region
      %vm27 = vcmask 25600
      %28 = vst.msk [vmem:[#allocation2] sm:$0x3] %vm27, -inf
      %29 = vst.msk [vmem:[#allocation3] sm:$0x3] %vm27, 0.0
    $region13: #{tpu_custom_call.1} parent=1 // pred_fallthru
      _
    %v30 = vld [vmem:[#allocation4] sm:$0xff]
    %v31 = vld [vmem:[#allocation4 + $0x8] sm:$0xff]
    %v32 = vld [vmem:[#allocation2] sm:$0x3]
    %v35 = vcombine.high %v30, %v30
    %v36 = vcombine.high %v31, %v31
    %vm39 = vcmask 1043456
    %v40 = vsel %vm39, %v30, -inf
    %v41 = vsel %vm39, %v35, -inf
    %v42 = vmax.f32 %v40, %v41
    %43 = vmax.xlane.f32.xlu0 %v42
    %v44 = vpop.xlane.xlu0 %43
    %v45 = vsel %vm39, %v31, -inf
    %v46 = vsel %vm39, %v36, -inf
    %v47 = vmax.f32 %v45, %v46
    %48 = vmax.xlane.f32.xlu0 %v47
    %v49 = vpop.xlane.xlu0 %48
    %v52 = vlaneseq
    %v53 = vand.u32 %v52, 127
    %v54 = vlaneseq
    %v55 = vshrl.u32 %v54, 7
    %v56 = vsub.s32 %v53, %v55
    %v57 = vrot.slane %v44, %v56
    %v58 = vlaneseq
    %v59 = vshrl.u32 %v58, 7
    %v60 = vsub.s32 %v53, %v59
    %v61 = vrot.slane %v49, %v60
    %vm62 = vcmask 1041409
    %v63 = vsel %vm62, %v61, %v57
    %v65 = vmax.f32 %v32, %v63
    %vm66 = vcmask 25600
    %67 = vst.msk [vmem:[#allocation2] sm:$0x3] %vm66, %v65
    %v68 = vld [vmem:[#allocation3] sm:$0x3]
    %v69 = vsel %vm39, %v30, 0.0
    %v70 = vsel %vm39, %v35, 0.0
    %v71 = vadd.f32 %v69, %v70
    %72 = vadd.xlane.f32.xlu0 %v71
    %v73 = vpop.xlane.xlu0 %72
    %v74 = vsel %vm39, %v31, 0.0
    %v75 = vsel %vm39, %v36, 0.0
    %v76 = vadd.f32 %v74, %v75
    %77 = vadd.xlane.f32.xlu0 %v76
    %v78 = vpop.xlane.xlu0 %77
    %v81 = vlaneseq
    %v82 = vshrl.u32 %v81, 7
    %v83 = vsub.s32 %v53, %v82
    %v84 = vrot.slane %v73, %v83
    %v85 = vlaneseq
    %v86 = vshrl.u32 %v85, 7
    %v87 = vsub.s32 %v53, %v86
    %v88 = vrot.slane %v78, %v87
    %v89 = vsel %vm62, %v88, %v84
    %v91 = vadd.f32 %v68, %v89
    %92 = vst.msk [vmem:[#allocation3] sm:$0x3] %vm66, %v91
    // Predicated region
    $region14: #{tpu_custom_call.1} parent=1 // pred_check
      %p93 = pneg %p23
    $region15: #{tpu_custom_call.1} parent=1 // pred_check_branch
      %95 = sbr.rel (%p93) target = $region17
    $region16: #{tpu_custom_call.1} parent=1 // pred_region
      %v96 = vld [vmem:[#allocation2] sm:$0x3]
      %v99 = vunpack.c.l.s4 1966171168
      %v100 = vunpack.c.0.s8 %v99
      %v101 = vlaneseq
      %v102 = vshrl.u32 %v101, 7
      %v103 = vsub.s32 %v100, %v102
      %v104 = vrot.slane %v96, %v103
      %v105 = vcombine.high %v104, %v104
      %v107 = vunpack.c.l.s4 1966171168
      %v108 = vunpack.c.0.s8 %v107
      %v109 = vlaneseq
      %v110 = vshrl.u32 %v109, 7
      %v111 = vsub.s32 %v108, %v110
      %v112 = vrot.slane %v104, %v111
      %v114 = vunpack.c.l.s4 1966171168
      %v115 = vunpack.c.0.s8 %v114
      %v116 = vlaneseq
      %v117 = vshrl.u32 %v116, 7
      %v118 = vsub.s32 %v115, %v117
      %v119 = vrot.slane %v105, %v118
      %vm122 = vcmask 24576
      %123 = vst.msk [vmem:[#allocation7] sm:$0x1] %vm122, %v112
      %124 = vst.msk [vmem:[#allocation7 + $0x2] sm:$0x1] %vm122, %v119
      %v125 = vld [vmem:[#allocation3] sm:$0x3]
      %v126 = vmul.f32 %v125, 0.00390625
      %v129 = vunpack.c.l.s4 1966171168
      %v130 = vunpack.c.0.s8 %v129
      %v131 = vlaneseq
      %v132 = vshrl.u32 %v131, 7
      %v133 = vsub.s32 %v130, %v132
      %v134 = vrot.slane %v126, %v133
      %v135 = vcombine.high %v134, %v134
      %v137 = vunpack.c.l.s4 1966171168
      %v138 = vunpack.c.0.s8 %v137
      %v139 = vlaneseq
      %v140 = vshrl.u32 %v139, 7
      %v141 = vsub.s32 %v138, %v140
      %v142 = vrot.slane %v134, %v141
      %v144 = vunpack.c.l.s4 1966171168
      %v145 = vunpack.c.0.s8 %v144
      %v146 = vlaneseq
      %v147 = vshrl.u32 %v146, 7
      %v148 = vsub.s32 %v145, %v147
      %v149 = vrot.slane %v135, %v148
      %152 = vst.msk [vmem:[#allocation7 + $0x1] sm:$0x1] %vm122, %v142
      %153 = vst.msk [vmem:[#allocation7 + $0x3] sm:$0x1] %vm122, %v149
    $region17: #{tpu_custom_call.1} parent=1 // pred_fallthru
      _
    // Predicated region
    $region18: #{tpu_custom_call.1} parent=1 // pred_check
      _
    $region19: #{tpu_custom_call.1} parent=1 // pred_check_branch
      %155 = sbr.rel (0) target = $region21
    $region20: #{tpu_custom_call.1} parent=1 // pred_region
      %s157 = ssub.s32 64, 64
      %158 = vsyncadd [#allocation6], %s157
      %s159 = sshll.u32 [#allocation7], 4
      %s160 = int_to_ptr.vmem [resolvable:$true] %s159
      %165 = dma.vmem_to_hbm [thread:$0]  %s160, 64, %s1, [#allocation6], 32, 32, 2
    $region21: #{tpu_custom_call.1} parent=1 // pred_fallthru
      _
    // Predicated region
    $region22: #{tpu_custom_call.1} parent=1 // pred_check
      _
    $region23: #{tpu_custom_call.1} parent=1 // pred_check_branch
      %167 = sbr.rel (0) target = $region25
    $region24: #{tpu_custom_call.1} parent=1 // pred_region
      %168 = dma.done [#allocation6], 64
    $region25: #{tpu_custom_call.1} parent=1 // pred_fallthru
      _
    %169 = vsyncpa [#allocation5], 1
    %170 = vsyncpa [#allocation6], 1

</llo_original>
